<compile_context>
chip_gen: v6e
topology: v6e:2x2x1
jax: 0.10.0
libtpu: 0.0.40
codegen_flags: <defaults>
</compile_context>

<pallas_src>
import functools

import jax
import jax.numpy as jnp
from jax.experimental import pallas as pl
from jax.experimental.pallas import tpu as pltpu


def _encoder_kernel(tok_ref, table_ref, w3_ref, cb_ref, aw_ref, ab_ref,
                    out_ref, ctx_ref, m_sc, l_sc, acc_sc, *, seq_len):
    """One (batch b, seq-tile st) step.

    tok_ref  : (1, 1, TS+2, 1) int32  halo'd token ids (PAD id -> zero emb row)
    table_ref: (V+1, E) bf16          embedding table (+ zero PAD row)
    w3_ref   : (3, E, H) bf16         conv taps for x[s-1], x[s], x[s+1]
    cb_ref   : (1, H) f32             conv bias
    aw_ref   : (1, H) f32             attention projection weight
    ab_ref   : (1, 1) f32 (SMEM)      attention projection bias (cancels in softmax)
    out_ref  : (1, TS, H) f32         features for this (b, st) tile
    ctx_ref  : (1, 1, H) f32          per-batch context (written at last st)
    m_sc/l_sc/acc_sc : online-softmax running max / denom / numerator scratch
    """
    st = pl.program_id(1)
    n_st = pl.num_programs(1)
    ts = out_ref.shape[1]

    @pl.when(st == 0)
    def _():
        m_sc[...] = jnp.full_like(m_sc, -jnp.inf)
        l_sc[...] = jnp.zeros_like(l_sc)
        acc_sc[...] = jnp.zeros_like(acc_sc)

    # ---- fused embedding gather: one-hot (TS+2, V+1) @ table (V+1, E) on MXU ----
    tok = tok_ref[0, 0]                                             # (TS+2, 1) int32
    vocab_p = table_ref.shape[0]
    onehot = (jax.lax.broadcasted_iota(jnp.int32, (ts + 2, vocab_p), 1)
              == tok).astype(jnp.bfloat16)                          # (TS+2, V+1)
    emb = jnp.dot(onehot, table_ref[...],
                  preferred_element_type=jnp.float32)               # exact row select
    emb = emb.astype(jnp.bfloat16)                                  # (TS+2, E)

    # ---- Conv1d(E->H, k=3, pad=1) over seq: 3-way bf16 MXU accumulation --------
    feats = (jnp.dot(emb[0:ts],        w3_ref[0], preferred_element_type=jnp.float32)
             + jnp.dot(emb[1:ts + 1],  w3_ref[1], preferred_element_type=jnp.float32)
             + jnp.dot(emb[2:ts + 2],  w3_ref[2], preferred_element_type=jnp.float32))
    feats = jnp.maximum(feats + cb_ref[...], 0.0)                   # (TS, H) f32

    out_ref[0] = feats

    # ---- additive attention + online (flash-style) softmax over the sequence ---
    scores = jnp.sum(feats * aw_ref[...], axis=1, keepdims=True) + ab_ref[0, 0]
    pos = st * ts + jax.lax.broadcasted_iota(jnp.int32, (ts, 1), 0)
    scores = jnp.where(pos < seq_len, scores, jnp.float32(-1e30))   # mask seq padding

    m_prev = m_sc[...]                                              # (1, 1)
    m_new = jnp.maximum(m_prev, jnp.max(scores, keepdims=True))     # per-batch max
    alpha = jnp.exp(m_prev - m_new)                                 # (1, 1)
    p = jnp.exp(scores - m_new)                                     # (TS, 1)
    l_sc[...] = alpha * l_sc[...] + jnp.sum(p, keepdims=True)
    acc_sc[...] = alpha * acc_sc[...] + jnp.sum(p * feats, axis=0, keepdims=True)
    m_sc[...] = m_new

    @pl.when(st == n_st - 1)
    def _():
        ctx_ref[0] = acc_sc[...] * pl.reciprocal(l_sc[...], approx=True)


def encoder_forward(x_tokens, params, *, tile_s=8):
    """x_tokens: (S, B) int32 token ids. Returns (output (S,B,H), context (1,B,H))."""
    S, B = x_tokens.shape
    table = params["embedding"]
    V, E = table.shape
    H = params["conv_b"].shape[-1]

    nt = pl.cdiv(S, tile_s)
    s_pad = nt * tile_s
    pad_id = V                                  # extra all-zero embedding row

    # Tiny int32 prep (XLA glue, negligible HBM): batch-major tokens with the
    # k=3 conv halo materialized per seq tile. Out-of-range positions -> PAD.
    tok_bm = x_tokens.T                                            # (B, S)
    tok_pad = jnp.full((B, s_pad + 2), pad_id, jnp.int32)
    tok_pad = tok_pad.at[:, 1:S + 1].set(tok_bm)
    tok_tiles = jnp.stack(
        [tok_pad[:, st * tile_s: st * tile_s + tile_s + 2] for st in range(nt)],
        axis=1)[..., None]                                         # (B, NT, TS+2, 1)

    table_bf = jnp.concatenate(
        [table, jnp.zeros((1, E), table.dtype)], axis=0).astype(jnp.bfloat16)
    w3 = jnp.stack([params["conv_w0"], params["conv_w1"], params["conv_w2"]],
                   axis=0).astype(jnp.bfloat16)                    # (3, E, H)

    feats_bm, ctx = pl.pallas_call(
        functools.partial(_encoder_kernel, seq_len=S),
        out_shape=(
            jax.ShapeDtypeStruct((B, s_pad, H), jnp.float32),
            jax.ShapeDtypeStruct((B, 1, H), jnp.float32),
        ),
        grid_spec=pltpu.PrefetchScalarGridSpec(
            num_scalar_prefetch=0,
            grid=(B, nt),
            in_specs=[
                pl.BlockSpec((1, 1, tile_s + 2, 1), lambda b, st: (b, st, 0, 0)),
                pl.BlockSpec((V + 1, E), lambda b, st: (0, 0)),        # table (resident)
                pl.BlockSpec((3, E, H), lambda b, st: (0, 0, 0)),      # conv taps
                pl.BlockSpec((1, H), lambda b, st: (0, 0)),            # conv bias
                pl.BlockSpec((1, H), lambda b, st: (0, 0)),            # attn weight
                pl.BlockSpec(memory_space=pltpu.MemorySpace.SMEM),     # attn bias scalar
            ],
            out_specs=(
                pl.BlockSpec((1, tile_s, H), lambda b, st: (b, st, 0)),
                pl.BlockSpec((1, 1, H), lambda b, st: (b, 0, 0)),
            ),
            scratch_shapes=[
                pltpu.VMEM((1, 1), jnp.float32),   # running max
                pltpu.VMEM((1, 1), jnp.float32),   # running denom
                pltpu.VMEM((1, H), jnp.float32),   # running numerator
            ],
        ),
        compiler_params=pltpu.CompilerParams(
            dimension_semantics=("parallel", "arbitrary"),
            vmem_limit_bytes=32 * 1024 * 1024,
        ),
    )(tok_tiles, table_bf, w3, params["conv_b"], params["attn_w"], params["attn_b"])

    output = jnp.transpose(feats_bm[:, :S, :], (1, 0, 2))   # 'bsh->sbh' (module contract)
    context = jnp.transpose(ctx, (1, 0, 2))                 # unsqueeze(0) -> (1, B, H)
    return output, context


def reference_forward(x_tokens, params):
    """Pure-JAX f32 reference for correctness checking."""
    emb = params["embedding"][x_tokens]
    xb = jnp.transpose(emb, (1, 0, 2))
    B, S, E = xb.shape
    xpad = jnp.pad(xb, ((0, 0), (1, 1), (0, 0)))
    feats = (xpad[:, 0:S] @ params["conv_w0"]
             + xpad[:, 1:S + 1] @ params["conv_w1"]
             + xpad[:, 2:S + 2] @ params["conv_w2"]
             + params["conv_b"])
    feats = jnp.maximum(feats, 0.0)
    scores = jnp.sum(feats * params["attn_w"], axis=-1, keepdims=True) + params["attn_b"]
    alpha = jax.nn.softmax(scores, axis=1)
    ctx = jnp.sum(alpha * feats, axis=1)
    return jnp.transpose(feats, (1, 0, 2)), ctx[None, ...]


if __name__ == "__main__":
    V, E, H = 50, 32, 32          # vocab, embed, hidden
    S, B = 12, 2                  # seq (non-multiple of tile -> exercises masking), batch
    key = jax.random.PRNGKey(0)
    ks = jax.random.split(key, 8)
    params = {
        "embedding": 0.1 * jax.random.normal(ks[0], (V, E), jnp.float32),
        "conv_w0":   0.1 * jax.random.normal(ks[1], (E, H), jnp.float32),
        "conv_w1":   0.1 * jax.random.normal(ks[2], (E, H), jnp.float32),
        "conv_w2":   0.1 * jax.random.normal(ks[3], (E, H), jnp.float32),
        "conv_b":    0.1 * jax.random.normal(ks[4], (1, H), jnp.float32),
        "attn_w":    0.1 * jax.random.normal(ks[5], (1, H), jnp.float32),
        "attn_b":    0.1 * jax.random.normal(ks[6], (1, 1), jnp.float32),
    }
    x = jax.random.randint(ks[7], (S, B), 0, V, dtype=jnp.int32)

    forward = jax.jit(functools.partial(encoder_forward, tile_s=8))
    output, context = forward(x, params)
    jax.block_until_ready((output, context))

    ref_out, ref_ctx = reference_forward(x, params)
    assert output.shape == (S, B, H) and context.shape == (1, B, H)
    assert jnp.allclose(output, ref_out, atol=2e-2, rtol=2e-2)   # bf16 MXU tolerance
    assert jnp.allclose(context, ref_ctx, atol=2e-2, rtol=2e-2)
    print("KERNEL_OK")
</pallas_src>

<mosaic_0001>
module attributes {stable_mosaic.version = 11 : i64} {
  func.func @_encoder_kernel(%arg0: i32, %arg1: i32, %arg2: memref<1x1x10x1xi32, #tpu.memory_space<vmem>>, %arg3: memref<51x32xbf16, #tpu.memory_space<vmem>>, %arg4: memref<3x32x32xbf16, #tpu.memory_space<vmem>>, %arg5: memref<1x32xf32, #tpu.memory_space<vmem>>, %arg6: memref<1x32xf32, #tpu.memory_space<vmem>>, %arg7: memref<1x1xf32, #tpu.memory_space<smem>>, %arg8: memref<1x8x32xf32, #tpu.memory_space<vmem>>, %arg9: memref<1x1x32xf32, #tpu.memory_space<vmem>>, %arg10: memref<1x1xf32, #tpu.memory_space<vmem>>, %arg11: memref<1x1xf32, #tpu.memory_space<vmem>>, %arg12: memref<1x32xf32, #tpu.memory_space<vmem>>) attributes {dimension_semantics = [#tpu.dimension_semantics<parallel>, #tpu.dimension_semantics<arbitrary>], iteration_bounds = array<i64: 2, 2>, scalar_prefetch = 0 : i64, scratch_operands = 3 : i64, tpu.core_type = #tpu.core_type<tc>, window_params = [{transform_indices = @transform_0, window_bounds = array<i64: 1, 1, 10, 1>}, {pipeline_mode = #tpu.pipeline_mode<synchronous>, transform_indices = @transform_1, window_bounds = array<i64: 51, 32>}, {pipeline_mode = #tpu.pipeline_mode<synchronous>, transform_indices = @transform_2, window_bounds = array<i64: 3, 32, 32>}, {pipeline_mode = #tpu.pipeline_mode<synchronous>, transform_indices = @transform_3, window_bounds = array<i64: 1, 32>}, {pipeline_mode = #tpu.pipeline_mode<synchronous>, transform_indices = @transform_4, window_bounds = array<i64: 1, 32>}, {transform_indices = @transform_5, window_bounds = array<i64: 1, 1>}, {transform_indices = @transform_6, window_bounds = array<i64: 1, 8, 32>}, {transform_indices = @transform_7, window_bounds = array<i64: 1, 1, 32>}]} {
    %c0_i32 = arith.constant 0 : i32
    %0 = arith.cmpi eq, %arg1, %c0_i32 : i32
    %1 = arith.extui %0 : i1 to i32
    %c0_i32_0 = arith.constant 0 : i32
    %2 = arith.cmpi ne, %1, %c0_i32_0 : i32
    scf.if %2 {
      %cst_44 = arith.constant 0xFF800000 : f32
      %86 = vector.broadcast %cst_44 : f32 to vector<1x1xf32>
      %c0_45 = arith.constant 0 : index
      %c0_46 = arith.constant 0 : index
      %87 = vector.load %arg10[%c0_45, %c0_46] : memref<1x1xf32, #tpu.memory_space<vmem>>, vector<1x1xf32>
      tpu.vector_store %arg10[%c0_45, %c0_46], %86 {strides = array<i32>} : memref<1x1xf32, #tpu.memory_space<vmem>>, vector<1x1xf32>,
      %cst_47 = arith.constant 0.000000e+00 : f32
      %88 = vector.broadcast %cst_47 : f32 to vector<1x1xf32>
      %c0_48 = arith.constant 0 : index
      %c0_49 = arith.constant 0 : index
      %89 = vector.load %arg11[%c0_48, %c0_49] : memref<1x1xf32, #tpu.memory_space<vmem>>, vector<1x1xf32>
      tpu.vector_store %arg11[%c0_48, %c0_49], %88 {strides = array<i32>} : memref<1x1xf32, #tpu.memory_space<vmem>>, vector<1x1xf32>,
      %cst_50 = arith.constant 0.000000e+00 : f32
      %90 = vector.broadcast %cst_50 : f32 to vector<1x32xf32>
      %c0_51 = arith.constant 0 : index
      %c0_52 = arith.constant 0 : index
      %91 = vector.load %arg12[%c0_51, %c0_52] : memref<1x32xf32, #tpu.memory_space<vmem>>, vector<1x32xf32>
      tpu.vector_store %arg12[%c0_51, %c0_52], %90 {strides = array<i32>} : memref<1x32xf32, #tpu.memory_space<vmem>>, vector<1x32xf32>,
    } else {
    }
    %c0 = arith.constant 0 : index
    %c0_1 = arith.constant 0 : index
    %c0_2 = arith.constant 0 : index
    %c0_3 = arith.constant 0 : index
    %3 = vector.load %arg2[%c0, %c0_1, %c0_2, %c0_3] : memref<1x1x10x1xi32, #tpu.memory_space<vmem>>, vector<1x1x10x1xi32>
    %4 = vector.shape_cast %3 : vector<1x1x10x1xi32> to vector<10x1xi32>
    %5 = tpu.iota {dimensions = array<i32: 1>} : vector<10x51xi32>
    %6 = vector.broadcast %4 : vector<10x1xi32> to vector<10x51xi32>
    %7 = arith.cmpi eq, %5, %6 : vector<10x51xi32>
    %8 = arith.extui %7 : vector<10x51xi1> to vector<10x51xi32>
    %9 = arith.sitofp %8 : vector<10x51xi32> to vector<10x51xf32>
    %10 = arith.truncf %9 : vector<10x51xf32> to vector<10x51xbf16>
    %c0_4 = arith.constant 0 : index
    %c0_5 = arith.constant 0 : index
    %11 = vector.load %arg3[%c0_4, %c0_5] : memref<51x32xbf16, #tpu.memory_space<vmem>>, vector<51x32xbf16>
    %cst = arith.constant dense<0.000000e+00> : vector<10x32xf32>
    %12 = tpu.matmul %10, %11, %cst {dimension_numbers = #tpu.dot_dimension_numbers<[1], [0], [0], [1], [0, 0, 1, 1], [], []>} : vector<10x51xbf16>, vector<51x32xbf16>, vector<10x32xf32> -> vector<10x32xf32>
    %13 = arith.truncf %12 : vector<10x32xf32> to vector<10x32xbf16>
    %14 = vector.extract_strided_slice %13 {offsets = [0, 0], sizes = [8, 32], strides = [1, 1]} : vector<10x32xbf16> to vector<8x32xbf16>
    %c0_6 = arith.constant 0 : index
    %c0_7 = arith.constant 0 : index
    %c0_8 = arith.constant 0 : index
    %15 = vector.load %arg4[%c0_6, %c0_7, %c0_8] : memref<3x32x32xbf16, #tpu.memory_space<vmem>>, vector<1x32x32xbf16>
    %16 = vector.shape_cast %15 : vector<1x32x32xbf16> to vector<32x32xbf16>
    %cst_9 = arith.constant dense<0.000000e+00> : vector<8x32xf32>
    %17 = tpu.matmul %14, %16, %cst_9 {dimension_numbers = #tpu.dot_dimension_numbers<[1], [0], [0], [1], [0, 0, 1, 1], [], []>} : vector<8x32xbf16>, vector<32x32xbf16>, vector<8x32xf32> -> vector<8x32xf32>
    %18 = vector.extract_strided_slice %13 {offsets = [1, 0], sizes = [8, 32], strides = [1, 1]} : vector<10x32xbf16> to vector<8x32xbf16>
    %c1 = arith.constant 1 : index
    %c0_10 = arith.constant 0 : index
    %c0_11 = arith.constant 0 : index
    %19 = vector.load %arg4[%c1, %c0_10, %c0_11] : memref<3x32x32xbf16, #tpu.memory_space<vmem>>, vector<1x32x32xbf16>
    %20 = vector.shape_cast %19 : vector<1x32x32xbf16> to vector<32x32xbf16>
    %cst_12 = arith.constant dense<0.000000e+00> : vector<8x32xf32>
    %21 = tpu.matmul %18, %20, %cst_12 {dimension_numbers = #tpu.dot_dimension_numbers<[1], [0], [0], [1], [0, 0, 1, 1], [], []>} : vector<8x32xbf16>, vector<32x32xbf16>, vector<8x32xf32> -> vector<8x32xf32>
    %22 = arith.addf %17, %21 : vector<8x32xf32>
    %23 = vector.extract_strided_slice %13 {offsets = [2, 0], sizes = [8, 32], strides = [1, 1]} : vector<10x32xbf16> to vector<8x32xbf16>
    %c2 = arith.constant 2 : index
    %c0_13 = arith.constant 0 : index
    %c0_14 = arith.constant 0 : index
    %24 = vector.load %arg4[%c2, %c0_13, %c0_14] : memref<3x32x32xbf16, #tpu.memory_space<vmem>>, vector<1x32x32xbf16>
    %25 = vector.shape_cast %24 : vector<1x32x32xbf16> to vector<32x32xbf16>
    %cst_15 = arith.constant dense<0.000000e+00> : vector<8x32xf32>
    %26 = tpu.matmul %23, %25, %cst_15 {dimension_numbers = #tpu.dot_dimension_numbers<[1], [0], [0], [1], [0, 0, 1, 1], [], []>} : vector<8x32xbf16>, vector<32x32xbf16>, vector<8x32xf32> -> vector<8x32xf32>
    %27 = arith.addf %22, %26 : vector<8x32xf32>
    %c0_16 = arith.constant 0 : index
    %c0_17 = arith.constant 0 : index
    %28 = vector.load %arg5[%c0_16, %c0_17] : memref<1x32xf32, #tpu.memory_space<vmem>>, vector<1x32xf32>
    %29 = vector.broadcast %28 : vector<1x32xf32> to vector<8x32xf32>
    %30 = arith.addf %27, %29 : vector<8x32xf32>
    %cst_18 = arith.constant 0.000000e+00 : f32
    %31 = vector.broadcast %cst_18 : f32 to vector<8x32xf32>
    %32 = arith.maximumf %30, %31 : vector<8x32xf32>
    %c0_19 = arith.constant 0 : index
    %c0_20 = arith.constant 0 : index
    %c0_21 = arith.constant 0 : index
    %33 = vector.load %arg8[%c0_19, %c0_20, %c0_21] : memref<1x8x32xf32, #tpu.memory_space<vmem>>, vector<1x8x32xf32>
    %34 = vector.shape_cast %33 : vector<1x8x32xf32> to vector<8x32xf32>
    %35 = vector.shape_cast %32 : vector<8x32xf32> to vector<1x8x32xf32>
    tpu.vector_store %arg8[%c0_19, %c0_20, %c0_21], %35 {strides = array<i32>} : memref<1x8x32xf32, #tpu.memory_space<vmem>>, vector<1x8x32xf32>,
    %c0_22 = arith.constant 0 : index
    %c0_23 = arith.constant 0 : index
    %36 = vector.load %arg6[%c0_22, %c0_23] : memref<1x32xf32, #tpu.memory_space<vmem>>, vector<1x32xf32>
    %37 = vector.broadcast %36 : vector<1x32xf32> to vector<8x32xf32>
    %38 = arith.mulf %32, %37 : vector<8x32xf32>
    %cst_24 = arith.constant dense<0.000000e+00> : vector<8xf32>
    %39 = vector.multi_reduction <add>, %38, %cst_24 [1] : vector<8x32xf32> to vector<8xf32>
    %40 = vector.shape_cast %39 : vector<8xf32> to vector<8x1xf32>
    %c0_25 = arith.constant 0 : index
    %c0_26 = arith.constant 0 : index
    %41 = memref.load %arg7[%c0_25, %c0_26] : memref<1x1xf32, #tpu.memory_space<smem>>
    %42 = vector.broadcast %41 : f32 to vector<8x1xf32>
    %43 = arith.addf %40, %42 : vector<8x1xf32>
    %c8_i32 = arith.constant 8 : i32
    %44 = arith.muli %arg1, %c8_i32 : i32
    %45 = tpu.iota {dimensions = array<i32: 0>} : vector<8x1xi32>
    %46 = vector.broadcast %44 : i32 to vector<8x1xi32>
    %47 = arith.addi %46, %45 : vector<8x1xi32>
    %c12_i32 = arith.constant 12 : i32
    %48 = vector.broadcast %c12_i32 : i32 to vector<8x1xi32>
    %49 = arith.cmpi slt, %47, %48 : vector<8x1xi32>
    %cst_27 = arith.constant -1.000000e+30 : f32
    %50 = vector.broadcast %cst_27 : f32 to vector<8x1xf32>
    %51 = arith.select %49, %43, %50 : vector<8x1xi1>, vector<8x1xf32>
    %c0_28 = arith.constant 0 : index
    %c0_29 = arith.constant 0 : index
    %52 = vector.load %arg10[%c0_28, %c0_29] : memref<1x1xf32, #tpu.memory_space<vmem>>, vector<1x1xf32>
    %53 = vector.shape_cast %51 : vector<8x1xf32> to vector<1x8x1xf32>
    %cst_30 = arith.constant dense<0xFF800000> : vector<1xf32>
    %54 = vector.multi_reduction <maximumf>, %53, %cst_30 [1, 2] : vector<1x8x1xf32> to vector<1xf32>
    %55 = vector.shape_cast %54 : vector<1xf32> to vector<1x1x1xf32>
    %56 = vector.extract %55[0, 0, 0] : f32 from vector<1x1x1xf32>
    %57 = vector.broadcast %56 : f32 to vector<1x1xf32>
    %58 = arith.maximumf %52, %57 : vector<1x1xf32>
    %59 = arith.subf %52, %58 : vector<1x1xf32>
    %60 = math.exp %59 : vector<1x1xf32>
    %61 = vector.broadcast %58 : vector<1x1xf32> to vector<8x1xf32>
    %62 = arith.subf %51, %61 : vector<8x1xf32>
    %63 = math.exp %62 : vector<8x1xf32>
    %c0_31 = arith.constant 0 : index
    %c0_32 = arith.constant 0 : index
    %64 = vector.load %arg11[%c0_31, %c0_32] : memref<1x1xf32, #tpu.memory_space<vmem>>, vector<1x1xf32>
    %65 = arith.mulf %60, %64 : vector<1x1xf32>
    %66 = vector.shape_cast %63 : vector<8x1xf32> to vector<1x8x1xf32>
    %cst_33 = arith.constant dense<0.000000e+00> : vector<1xf32>
    %67 = vector.multi_reduction <add>, %66, %cst_33 [1, 2] : vector<1x8x1xf32> to vector<1xf32>
    %68 = vector.shape_cast %67 : vector<1xf32> to vector<1x1x1xf32>
    %69 = vector.extract %68[0, 0, 0] : f32 from vector<1x1x1xf32>
    %70 = vector.broadcast %69 : f32 to vector<1x1xf32>
    %71 = arith.addf %65, %70 : vector<1x1xf32>
    %c0_34 = arith.constant 0 : index
    %c0_35 = arith.constant 0 : index
    %72 = vector.load %arg11[%c0_34, %c0_35] : memref<1x1xf32, #tpu.memory_space<vmem>>, vector<1x1xf32>
    tpu.vector_store %arg11[%c0_34, %c0_35], %71 {strides = array<i32>} : memref<1x1xf32, #tpu.memory_space<vmem>>, vector<1x1xf32>,
    %c0_36 = arith.constant 0 : index
    %c0_37 = arith.constant 0 : index
    %73 = vector.load %arg12[%c0_36, %c0_37] : memref<1x32xf32, #tpu.memory_space<vmem>>, vector<1x32xf32>
    %74 = vector.broadcast %60 : vector<1x1xf32> to vector<1x32xf32>
    %75 = arith.mulf %74, %73 : vector<1x32xf32>
    %76 = vector.broadcast %63 : vector<8x1xf32> to vector<8x32xf32>
    %77 = arith.mulf %76, %32 : vector<8x32xf32>
    %cst_38 = arith.constant dense<0.000000e+00> : vector<32xf32>
    %78 = vector.multi_reduction <add>, %77, %cst_38 [0] : vector<8x32xf32> to vector<32xf32>
    %79 = vector.shape_cast %78 : vector<32xf32> to vector<1x32xf32>
    %80 = arith.addf %75, %79 : vector<1x32xf32>
    %c0_39 = arith.constant 0 : index
    %c0_40 = arith.constant 0 : index
    %81 = vector.load %arg12[%c0_39, %c0_40] : memref<1x32xf32, #tpu.memory_space<vmem>>, vector<1x32xf32>
    tpu.vector_store %arg12[%c0_39, %c0_40], %80 {strides = array<i32>} : memref<1x32xf32, #tpu.memory_space<vmem>>, vector<1x32xf32>,
    %c0_41 = arith.constant 0 : index
    %c0_42 = arith.constant 0 : index
    %82 = vector.load %arg10[%c0_41, %c0_42] : memref<1x1xf32, #tpu.memory_space<vmem>>, vector<1x1xf32>
    tpu.vector_store %arg10[%c0_41, %c0_42], %58 {strides = array<i32>} : memref<1x1xf32, #tpu.memory_space<vmem>>, vector<1x1xf32>,
    %c1_i32 = arith.constant 1 : i32
    %83 = arith.cmpi eq, %arg1, %c1_i32 : i32
    %84 = arith.extui %83 : i1 to i32
    %c0_i32_43 = arith.constant 0 : i32
    %85 = arith.cmpi ne, %84, %c0_i32_43 : i32
    scf.if %85 {
      %c0_44 = arith.constant 0 : index
      %c0_45 = arith.constant 0 : index
      %86 = vector.load %arg12[%c0_44, %c0_45] : memref<1x32xf32, #tpu.memory_space<vmem>>, vector<1x32xf32>
      %c0_46 = arith.constant 0 : index
      %c0_47 = arith.constant 0 : index
      %87 = vector.load %arg11[%c0_46, %c0_47] : memref<1x1xf32, #tpu.memory_space<vmem>>, vector<1x1xf32>
      %88 = tpu.reciprocal %87 {approx = true} : vector<1x1xf32> -> vector<1x1xf32>
      %89 = vector.broadcast %88 : vector<1x1xf32> to vector<1x32xf32>
      %90 = arith.mulf %86, %89 : vector<1x32xf32>
      %c0_48 = arith.constant 0 : index
      %c0_49 = arith.constant 0 : index
      %c0_50 = arith.constant 0 : index
      %91 = vector.load %arg9[%c0_48, %c0_49, %c0_50] : memref<1x1x32xf32, #tpu.memory_space<vmem>>, vector<1x1x32xf32>
      %92 = vector.shape_cast %91 : vector<1x1x32xf32> to vector<1x32xf32>
      %93 = vector.shape_cast %90 : vector<1x32xf32> to vector<1x1x32xf32>
      tpu.vector_store %arg9[%c0_48, %c0_49, %c0_50], %93 {strides = array<i32>} : memref<1x1x32xf32, #tpu.memory_space<vmem>>, vector<1x1x32xf32>,
    } else {
    }
    return
  }
  func.func @transform_0(%arg0: i32, %arg1: i32) -> (i32, i32, i32, i32) {
    %c0_i32 = arith.constant 0 : i32
    %c0_i32_0 = arith.constant 0 : i32
    %c0_i32_1 = arith.constant 0 : i32
    return %arg0, %arg1, %c0_i32, %c0_i32_0 : i32, i32, i32, i32
  }
  func.func @transform_1(%arg0: i32, %arg1: i32) -> (i32, i32) {
    %c0_i32 = arith.constant 0 : i32
    %c0_i32_0 = arith.constant 0 : i32
    %c0_i32_1 = arith.constant 0 : i32
    return %c0_i32, %c0_i32_0 : i32, i32
  }
  func.func @transform_2(%arg0: i32, %arg1: i32) -> (i32, i32, i32) {
    %c0_i32 = arith.constant 0 : i32
    %c0_i32_0 = arith.constant 0 : i32
    %c0_i32_1 = arith.constant 0 : i32
    %c0_i32_2 = arith.constant 0 : i32
    return %c0_i32, %c0_i32_0, %c0_i32_1 : i32, i32, i32
  }
  func.func @transform_3(%arg0: i32, %arg1: i32) -> (i32, i32) {
    %c0_i32 = arith.constant 0 : i32
    %c0_i32_0 = arith.constant 0 : i32
    %c0_i32_1 = arith.constant 0 : i32
    return %c0_i32, %c0_i32_0 : i32, i32
  }
  func.func @transform_4(%arg0: i32, %arg1: i32) -> (i32, i32) {
    %c0_i32 = arith.constant 0 : i32
    %c0_i32_0 = arith.constant 0 : i32
    %c0_i32_1 = arith.constant 0 : i32
    return %c0_i32, %c0_i32_0 : i32, i32
  }
  func.func @transform_5(%arg0: i32, %arg1: i32) -> (i32, i32) {
    %c0_i32 = arith.constant 0 : i32
    %c0_i32_0 = arith.constant 0 : i32
    %c0_i32_1 = arith.constant 0 : i32
    return %c0_i32, %c0_i32_0 : i32, i32
  }
  func.func @transform_6(%arg0: i32, %arg1: i32) -> (i32, i32, i32) {
    %c0_i32 = arith.constant 0 : i32
    %c0_i32_0 = arith.constant 0 : i32
    return %arg0, %arg1, %c0_i32 : i32, i32, i32
  }
  func.func @transform_7(%arg0: i32, %arg1: i32) -> (i32, i32, i32) {
    %c0_i32 = arith.constant 0 : i32
    %c0_i32_0 = arith.constant 0 : i32
    %c0_i32_1 = arith.constant 0 : i32
    return %arg0, %c0_i32, %c0_i32_0 : i32, i32, i32
  }
}

</mosaic_0001>

<llo_original>
// kernel: encoder_forward.1
$region0: #{encoder_forward.1}
  #allocation0 [shape = 'u32[]', space=smem, size = 0x4, offset = 0x4, fixed_abs, tag = 'smem constant byte address 0x4 - core index']
  #allocation1 [shape = 'u32[144,128]{1,0:T(1,128)}', space=vmem, size = 0x12000, scoped, tag = 'internal scratch']
  #allocation2 [shape = 'f32[1,1]{1,0:T(1,128)}', space=vmem, size = 0x200, scoped, tag = 'scratch operand']
  #allocation3 [shape = 'f32[1,1]{1,0:T(1,128)}', space=vmem, size = 0x200, scoped, tag = 'scratch operand']
  #allocation4 [shape = 'f32[1,32]{1,0:T(1,128)}', space=vmem, size = 0x200, scoped, tag = 'scratch operand']
  #allocation5 [shape = 'f32[1,1]{1,0:T(1,128)S(6)}', space=smem, size = 0x200, scoped, tag = 'scoped memory for encoder_forward.1']
  %s0 = inlined_call_operand.vmem [shape: s32[2,2,10,1], index: 0, kind: input, shape index: {}]
  %s1 = inlined_call_operand.vmem [shape: bf16[51,32], index: 1, kind: input, shape index: {}]
  %s2 = inlined_call_operand.vmem [shape: bf16[3,32,32], index: 2, kind: input, shape index: {}]
  %s3 = inlined_call_operand.vmem [shape: f32[1,32], index: 3, kind: input, shape index: {}]
  %s4 = inlined_call_operand.vmem [shape: f32[1,32], index: 4, kind: input, shape index: {}]
  %s5 = inlined_call_operand.<no memory space> [shape: f32[1,1], index: 5, kind: input, shape index: {}]
  %s6 = inlined_call_operand.vmem [shape: f32[2,16,32], index: 6, kind: output, shape index: {0}]
  %s7 = inlined_call_operand.hbm [shape: f32[2,1,32], index: 7, kind: output, shape index: {1}]
  %8 = xla_tuple %s6, %s7
  %s9 = sld [smem:[#allocation0]]
  $region73: #{encoder_forward.1} parent=0
    _
  %s11 = ssub.s32 1, %s9
  %s12 = scalar_select 0, %s11, %s9
  %13 = sst [smem:[#allocation5]] %s5
  $region1: #{encoder_forward.1} parent=0
    #allocation6 [shape = 'u8[1024]{0}', space=vmem, size = 0x400, scoped, tag = 'output window, operand 1']
    #allocation7 [shape = 's32[2]{0}', space=sflag, size = 0x8, scoped, tag = 'scoped memory for encoder_forward.1']
    %14 = vsyncpa [#allocation7], 0
    %s15 = scalar_lea.sflag [#allocation7], 1
    %16 = vsyncpa %s15, 0
    loop: start=0, step=1, limit=6
    $region2: #{encoder_forward.1} parent=1 // loop_pre_header
      _
    $region3: #{encoder_forward.1} parent=1 // loop_header
      %s18 = sphi 0, %s22
      %p19 = scmp.ge.s32.totalorder %s18, 6
      %s25 = sphi 0, %s37
      %s26 = sphi 0, %s33
      %s27 = sphi 0, %s25
      %s28 = sphi 0, %s26
      %s29 = sphi 0, %s27
      %s30 = sphi 0, %s28
      %s42 = sphi 0, %s44
      %s45 = sphi 0, %s42
      %s46 = sphi 0, %s45
      %s62 = sphi 0, %s46
      %s66 = sphi 0, %s66
      %s68 = sphi 0, %s66
      %s69 = sphi 0, %s68
      %s83 = sphi 0, %s69
      %s87 = sphi 0, %s87
      %s89 = sphi 0, %s87
      %s90 = sphi 0, %s89
      %s104 = sphi 0, %s90
      %s108 = sphi 0, %s108
      %s110 = sphi 0, %s108
      %s111 = sphi 0, %s110
      %s125 = sphi 0, %s111
      %s129 = sphi 0, %s129
      %s131 = sphi 0, %s129
      %s132 = sphi 0, %s131
      %s146 = sphi 0, %s132
      %s150 = sphi 0, %s150
      %s152 = sphi 0, %s150
      %s153 = sphi 0, %s152
      %s167 = sphi 0, %s153
      %s175 = sphi 0, %s177
      %s178 = sphi 0, %s175
      %s179 = sphi 0, %s178
      %s195 = sphi 0, %s179
      %s201 = sphi 0, %s203
      %s204 = sphi 0, %s201
      %s205 = sphi 0, %s204
      %s221 = sphi 0, %s205
    $region4: #{encoder_forward.1} parent=1 // loop_header_branch
      %21 = sbr.rel (%p19) target = $region8
    $region5: #{encoder_forward.1} parent=1 // loop_body
      %s23 = ssub.s32 %s18, 1
      %s24 = ssub.s32 %s18, 2
      %s31 = sadd.s32 1, %s26
      %p32 = scmp.ge.s32.totalorder %s31, 2
      %s33 = scalar_select %p32, 0, %s31
      %s34 = sadd.s32 1, %s25
      %s35 = scalar_select %p32, %s34, %s25
      %p36 = scmp.ge.s32.totalorder %s35, 2
      %s37 = scalar_select %p36, 0, %s35
      %s38 = ssub.s32 %s25, %s37
      %s39 = ssub.s32 %s26, %s33
      %s40 = sor.u32 %s38, %s39
      %p41 = scmp.eq.s32.totalorder %s40, 0
      %s43 = sadd.s32 %s42, 1
      %s44 = scalar_select %p41, %s42, %s43
      %p47 = pneg %p41
      %p48 = scmp.eq.s32.totalorder %s18, 3
      %p49 = por %p47, %p48
      %p50 = scmp.ne.s32.totalorder %s42, %s45
      %p51 = scmp.eq.s32.totalorder %s18, 0
      %p52 = por %p50, %p51
      %p53 = scmp.ne.s32.totalorder %s42, %s45
      %p54 = scmp.eq.s32.totalorder %s23, 3
      %p55 = por %p53, %p54
      %p56 = scmp.ne.s32.totalorder %s45, %s46
      %p57 = scmp.eq.s32.totalorder %s23, 0
      %p58 = por %p56, %p57
      %p59 = scmp.ne.s32.totalorder %s45, %s46
      %p60 = scmp.eq.s32.totalorder %s24, 3
      %p61 = por %p59, %p60
      %p63 = scmp.ne.s32.totalorder %s46, %s62
      %p64 = scmp.eq.s32.totalorder %s24, 0
      %p65 = por %p63, %p64
      %s67 = sadd.s32 %s66, 1
      %p70 = scmp.eq.s32.totalorder %s18, 3
      %p71 = scmp.ne.s32.totalorder %s66, %s68
      %p72 = scmp.eq.s32.totalorder %s18, 0
      %p73 = por %p71, %p72
      %p74 = scmp.ne.s32.totalorder %s66, %s68
      %p75 = scmp.eq.s32.totalorder %s23, 3
      %p76 = por %p74, %p75
      %p77 = scmp.ne.s32.totalorder %s68, %s69
      %p78 = scmp.eq.s32.totalorder %s23, 0
      %p79 = por %p77, %p78
      %p80 = scmp.ne.s32.totalorder %s68, %s69
      %p81 = scmp.eq.s32.totalorder %s24, 3
      %p82 = por %p80, %p81
      %p84 = scmp.ne.s32.totalorder %s69, %s83
      %p85 = scmp.eq.s32.totalorder %s24, 0
      %p86 = por %p84, %p85
      %s88 = sadd.s32 %s87, 1
      %p91 = scmp.eq.s32.totalorder %s18, 3
      %p92 = scmp.ne.s32.totalorder %s87, %s89
      %p93 = scmp.eq.s32.totalorder %s18, 0
      %p94 = por %p92, %p93
      %p95 = scmp.ne.s32.totalorder %s87, %s89
      %p96 = scmp.eq.s32.totalorder %s23, 3
      %p97 = por %p95, %p96
      %p98 = scmp.ne.s32.totalorder %s89, %s90
      %p99 = scmp.eq.s32.totalorder %s23, 0
      %p100 = por %p98, %p99
      %p101 = scmp.ne.s32.totalorder %s89, %s90
      %p102 = scmp.eq.s32.totalorder %s24, 3
      %p103 = por %p101, %p102
      %p105 = scmp.ne.s32.totalorder %s90, %s104
      %p106 = scmp.eq.s32.totalorder %s24, 0
      %p107 = por %p105, %p106
      %s109 = sadd.s32 %s108, 1
      %p112 = scmp.eq.s32.totalorder %s18, 3
      %p113 = scmp.ne.s32.totalorder %s108, %s110
      %p114 = scmp.eq.s32.totalorder %s18, 0
      %p115 = por %p113, %p114
      %p116 = scmp.ne.s32.totalorder %s108, %s110
      %p117 = scmp.eq.s32.totalorder %s23, 3
      %p118 = por %p116, %p117
      %p119 = scmp.ne.s32.totalorder %s110, %s111
      %p120 = scmp.eq.s32.totalorder %s23, 0
      %p121 = por %p119, %p120
      %p122 = scmp.ne.s32.totalorder %s110, %s111
      %p123 = scmp.eq.s32.totalorder %s24, 3
      %p124 = por %p122, %p123
      %p126 = scmp.ne.s32.totalorder %s111, %s125
      %p127 = scmp.eq.s32.totalorder %s24, 0
      %p128 = por %p126, %p127
      %s130 = sadd.s32 %s129, 1
      %p133 = scmp.eq.s32.totalorder %s18, 3
      %p134 = scmp.ne.s32.totalorder %s129, %s131
      %p135 = scmp.eq.s32.totalorder %s18, 0
      %p136 = por %p134, %p135
      %p137 = scmp.ne.s32.totalorder %s129, %s131
      %p138 = scmp.eq.s32.totalorder %s23, 3
      %p139 = por %p137, %p138
      %p140 = scmp.ne.s32.totalorder %s131, %s132
      %p141 = scmp.eq.s32.totalorder %s23, 0
      %p142 = por %p140, %p141
      %p143 = scmp.ne.s32.totalorder %s131, %s132
      %p144 = scmp.eq.s32.totalorder %s24, 3
      %p145 = por %p143, %p144
      %p147 = scmp.ne.s32.totalorder %s132, %s146
      %p148 = scmp.eq.s32.totalorder %s24, 0
      %p149 = por %p147, %p148
      %s151 = sadd.s32 %s150, 1
      %p154 = scmp.eq.s32.totalorder %s18, 3
      %p155 = scmp.ne.s32.totalorder %s150, %s152
      %p156 = scmp.eq.s32.totalorder %s18, 0
      %p157 = por %p155, %p156
      %p158 = scmp.ne.s32.totalorder %s150, %s152
      %p159 = scmp.eq.s32.totalorder %s23, 3
      %p160 = por %p158, %p159
      %p161 = scmp.ne.s32.totalorder %s152, %s153
      %p162 = scmp.eq.s32.totalorder %s23, 0
      %p163 = por %p161, %p162
      %p164 = scmp.ne.s32.totalorder %s152, %s153
      %p165 = scmp.eq.s32.totalorder %s24, 3
      %p166 = por %p164, %p165
      %p168 = scmp.ne.s32.totalorder %s153, %s167
      %p169 = scmp.eq.s32.totalorder %s24, 0
      %p170 = por %p168, %p169
      %s171 = ssub.s32 %s25, %s37
      %s172 = ssub.s32 %s26, %s33
      %s173 = sor.u32 %s171, %s172
      %p174 = scmp.eq.s32.totalorder %s173, 0
      %s176 = sadd.s32 %s175, 1
      %s177 = scalar_select %p174, %s175, %s176
      %p180 = pneg %p174
      %p181 = scmp.eq.s32.totalorder %s18, 3
      %p182 = por %p180, %p181
      %p183 = scmp.ne.s32.totalorder %s175, %s178
      %p184 = scmp.eq.s32.totalorder %s18, 0
      %p185 = por %p183, %p184
      %p186 = scmp.ne.s32.totalorder %s175, %s178
      %p187 = scmp.eq.s32.totalorder %s23, 3
      %p188 = por %p186, %p187
      %p189 = scmp.ne.s32.totalorder %s178, %s179
      %p190 = scmp.eq.s32.totalorder %s23, 0
      %p191 = por %p189, %p190
      %p192 = scmp.ne.s32.totalorder %s178, %s179
      %p193 = scmp.eq.s32.totalorder %s24, 3
      %p194 = por %p192, %p193
      %p196 = scmp.ne.s32.totalorder %s179, %s195
      %p197 = scmp.eq.s32.totalorder %s24, 0
      %p198 = por %p196, %p197
      %s199 = ssub.s32 %s25, %s37
      %p200 = scmp.eq.s32.totalorder %s199, 0
      %s202 = sadd.s32 %s201, 1
      %s203 = scalar_select %p200, %s201, %s202
      %p206 = pneg %p200
      %p207 = scmp.eq.s32.totalorder %s18, 3
      %p208 = por %p206, %p207
      %p209 = scmp.ne.s32.totalorder %s201, %s204
      %p210 = scmp.eq.s32.totalorder %s18, 0
      %p211 = por %p209, %p210
      %p212 = scmp.ne.s32.totalorder %s201, %s204
      %p213 = scmp.eq.s32.totalorder %s23, 3
      %p214 = por %p212, %p213
      %p215 = scmp.ne.s32.totalorder %s204, %s205
      %p216 = scmp.eq.s32.totalorder %s23, 0
      %p217 = por %p215, %p216
      %p218 = scmp.ne.s32.totalorder %s204, %s205
      %p219 = scmp.eq.s32.totalorder %s24, 3
      %p220 = por %p218, %p219
      %p222 = scmp.ne.s32.totalorder %s205, %s221
      %p223 = scmp.eq.s32.totalorder %s24, 0
      %p224 = por %p222, %p223
      %p225 = scmp.le.s32.totalorder 1, %s18
      %p226 = scmp.lt.s32.totalorder %s18, 5
      %p227 = pnand %p225, %p226
      %p228 = pneg %p227
      // Predicated region
      $region9: #{encoder_forward.1} parent=5 // pred_check
        _
      $region10: #{encoder_forward.1} parent=5 // pred_check_branch
        %230 = sbr.rel (%p227) target = $region12
      $region11: #{encoder_forward.1} parent=5 // pred_region
        %s231 = ssub.s32 %s18, 1
        // Predicated region
        $region13: #{encoder_forward.1} parent=11 // pred_check
          %p232 = pneg %p79
        $region14: #{encoder_forward.1} parent=11 // pred_check_branch
          %234 = sbr.rel (%p232) target = $region16
        $region15: #{encoder_forward.1} parent=11 // pred_region
          _
        $region16: #{encoder_forward.1} parent=11 // pred_fallthru
          _
        // Predicated region
        $region17: #{encoder_forward.1} parent=11 // pred_check
          %p235 = pneg %p100
        $region18: #{encoder_forward.1} parent=11 // pred_check_branch
          %237 = sbr.rel (%p235) target = $region20
        $region19: #{encoder_forward.1} parent=11 // pred_region
          _
        $region20: #{encoder_forward.1} parent=11 // pred_fallthru
          _
        // Predicated region
        $region21: #{encoder_forward.1} parent=11 // pred_check
          %p238 = pneg %p121
        $region22: #{encoder_forward.1} parent=11 // pred_check_branch
          %240 = sbr.rel (%p238) target = $region24
        $region23: #{encoder_forward.1} parent=11 // pred_region
          _
        $region24: #{encoder_forward.1} parent=11 // pred_fallthru
          _
        // Predicated region
        $region25: #{encoder_forward.1} parent=11 // pred_check
          %p241 = pneg %p142
        $region26: #{encoder_forward.1} parent=11 // pred_check_branch
          %243 = sbr.rel (%p241) target = $region28
        $region27: #{encoder_forward.1} parent=11 // pred_region
          _
        $region28: #{encoder_forward.1} parent=11 // pred_fallthru
          _
        // Predicated region
        $region29: #{encoder_forward.1} parent=11 // pred_check
          %p244 = pneg %p163
        $region30: #{encoder_forward.1} parent=11 // pred_check_branch
          %246 = sbr.rel (%p244) target = $region32
        $region31: #{encoder_forward.1} parent=11 // pred_region
          _
        $region32: #{encoder_forward.1} parent=11 // pred_fallthru
          _
      $region12: #{encoder_forward.1} parent=5 // pred_fallthru
        _
      %p247 = scmp.lt.s32.totalorder %s18, 4
      // Predicated region
      $region33: #{encoder_forward.1} parent=5 // pred_check
        %p248 = pneg %p247
      $region34: #{encoder_forward.1} parent=5 // pred_check_branch
        %250 = sbr.rel (%p248) target = $region36
      $region35: #{encoder_forward.1} parent=5 // pred_region
        // Predicated region
        $region37: #{encoder_forward.1} parent=35 // pred_check
          %p251 = pneg %p52
        $region38: #{encoder_forward.1} parent=35 // pred_check_branch
          %253 = sbr.rel (%p251) target = $region40
        $region39: #{encoder_forward.1} parent=35 // pred_region
          %p254 = scmp.lt.s32.totalorder %s25, 1
          %s255 = scalar_select %p254, %s25, 1
          %p256 = scmp.lt.s32.totalorder %s26, 1
          %s257 = scalar_select %p256, %s26, 1
          %s258 = smul.addr %s257, 2
          %s259 = smul.addr %s255, 4
          %s260 = sadd.s32 %s258, %s259
          %s261 = smul.addr %s260, 8
          %s262 = scalar_lea.vmem %s0, %s261
        $region40: #{encoder_forward.1} parent=35 // pred_fallthru
          _
      $region36: #{encoder_forward.1} parent=5 // pred_fallthru
        _
      %p263 = scmp.le.s32.totalorder 1, %s18
      %p264 = scmp.lt.s32.totalorder %s18, 5
      %p265 = pnand %p263, %p264
      %p266 = pneg %p265
      // Predicated region
      $region41: #{encoder_forward.1} parent=5 // pred_check
        _
      $region42: #{encoder_forward.1} parent=5 // pred_check_branch
        %268 = sbr.rel (%p265) target = $region44
      $region43: #{encoder_forward.1} parent=5 // pred_region
        %s269 = ssub.s32 %s18, 1
        %p270 = scmp.lt.s32.totalorder %s27, 1
        %s271 = scalar_select %p270, %s27, 1
        %p272 = scmp.lt.s32.totalorder %s28, 1
        %s273 = scalar_select %p272, %s28, 1
        %s274 = smul.addr %s273, 2
        %s275 = smul.addr %s271, 4
        %s276 = sadd.s32 %s274, %s275
        %s277 = smul.addr %s276, 8
        %s278 = scalar_lea.vmem %s0, %s277
        %p279 = pneg %p58
        %p280 = pneg %p55
        %p281 = pneg %p79
        %p282 = pneg %p76
        %p283 = pneg %p100
        %p284 = pneg %p97
        %p285 = pneg %p121
        %p286 = pneg %p118
        %p287 = pneg %p142
        %p288 = pneg %p139
        %p289 = pneg %p163
        %p290 = pneg %p160
        %p291 = pneg %p191
        %p292 = pneg %p188
        %p293 = scmp.lt.s32.totalorder %s27, 1
        %s294 = scalar_select %p293, %s27, 1
        %p295 = scmp.lt.s32.totalorder %s28, 1
        %s296 = scalar_select %p295, %s28, 1
        %s297 = smul.addr %s294, 2
        %s298 = sadd.s32 %s296, %s297
        %s299 = smul.addr %s298, 8
        %s300 = scalar_lea.vmem %s6, %s299
        %p301 = pneg %p217
        %p302 = pneg %p214
        %s303 = sand.u32 %s204, 1
        %s304 = scalar_lea.sflag [#allocation7], %s303
        %s305 = sand.u32 %s204, 1
        %s306 = scalar_lea.vmem [#allocation6], %s305
        %p307 = scmp.lt.s32.totalorder %s27, 1
        %s308 = scalar_select %p307, %s27, 1
        %p309 = scmp.lt.s32.totalorder %s28, 1
        %s310 = scalar_select %p309, %s28, 1
        %s311 = smul.addr %s310, 2
        %s312 = smul.addr %s308, 4
        %s313 = sadd.s32 %s311, %s312
        %s314 = smul.addr %s313, 8
        %s315 = scalar_lea.vmem %s0, %s314
        %p316 = scmp.lt.s32.totalorder %s27, 1
        %s317 = scalar_select %p316, %s27, 1
        %p318 = scmp.lt.s32.totalorder %s28, 1
        %s319 = scalar_select %p318, %s28, 1
        %s320 = smul.addr %s317, 2
        %s321 = sadd.s32 %s319, %s320
        %s322 = smul.addr %s321, 8
        %s323 = scalar_lea.vmem %s6, %s322
        %p325 = scmp.eq.s32.totalorder %s28, 0
        // Predicated region
        $region45: #{encoder_forward.1} parent=43 // pred_check
          %p326 = pneg %p325
        $region46: #{encoder_forward.1} parent=43 // pred_check_branch
          %328 = sbr.rel (%p326) target = $region48
        $region47: #{encoder_forward.1} parent=43 // pred_region
          %vm329 = vcmask 0
          %330 = vst.msk [vmem:[#allocation2] sm:$0x1] %vm329, -inf
          %331 = vst.msk [vmem:[#allocation3] sm:$0x1] %vm329, 0.0
          %vm332 = vcmask 253952
          %333 = vst.msk [vmem:[#allocation4] sm:$0x1] %vm332, 0.0
        $region48: #{encoder_forward.1} parent=43 // pred_fallthru
          _
        %v334 = vld [vmem:[%s315] sm:$0xff]
        %v335 = vld [vmem:[%s315 + $0x8] sm:$0x3]
        %v336 = vlaneseq
        %v337 = vand.u32 %v336, 127
        %338 = vset.pattern.permute.xlu0 0
        %339 = vperm.xlu0 %338, %v334
        %v340 = vpop.permute.xlu0 %339
        %341 = vset.pattern.permute.xlu0 0
        %342 = vperm.xlu0 %341, %v335
        %v343 = vpop.permute.xlu0 %342
        %vm344 = vcmp.eq.s32.totalorder %v337, %v340
        %vm345 = vcmp.eq.s32.totalorder %v337, %v343
        %v346 = vsel %vm344, 1, 0
        %v347 = vsel %vm345, 1, 0
        %v348 = vcvt.s32.f32 %v346
        %v349 = vcvt.s32.f32 %v347
        %v350 = vpack.c.bf16 %v349, %v348
        %v351 = vld [vmem:[%s1] sm:$0xf]
        %v352 = vld [vmem:[%s1 + $0x4] sm:$0xf]
        %v353 = vld [vmem:[%s1 + $0x8] sm:$0xf]
        %v354 = vld [vmem:[%s1 + $0xc] sm:$0xf]
        %v355 = vld [vmem:[%s1 + $0x10] sm:$0xf]
        %v356 = vld [vmem:[%s1 + $0x14] sm:$0xf]
        %v357 = vld [vmem:[%s1 + $0x18] sm:$0x3]
        %v365 = vunpack.c.l.b16 %v351
        %v366 = vunpack.c.l.b16 %v352
        %v367 = vunpack.c.l.b16 %v353
        %v368 = vunpack.c.l.b16 %v354
        %v369 = vunpack.c.l.b16 %v355
        %v370 = vunpack.c.l.b16 %v356
        %v371 = vunpack.c.l.b16 %v357
        %v372 = vpack.c.b16 %v366, %v365
        %v373 = vpack.c.b16 %v368, %v367
        %v374 = vpack.c.b16 %v370, %v369
        %v375 = vpack.c.b16 %v371, %v371
        %vm379 = vcmask 416768
        %v381 = vsel %vm379, %v350, 0
        %vm383 = vcmask 1040384
        %vm384 = vcmask 1041408
        %v385 = vsel %vm383, 4294967295, 65535
        %v386 = vsel %vm384, %v385, 0
        %v388 = vand.u32 %v375, %v386
        %390 = vmatprep.subr.bf16.mxu0 0
        %391 = vmatpush1.bf16.msra.mxu0 0
        %392 = vmatprep.subr.bf16.mxu0 0
        %393 = vmatpush1.bf16.msra.mxu0 0
        %394 = vmatprep.subr.bf16.mxu0 0
        %395 = vmatpush1.bf16.msra.mxu0 0
        %396 = vmatprep.subr.bf16.mxu0 0
        %397 = vmatpush1.bf16.msra.mxu0 0
        %398 = vmatprep.subr.bf16.mxu0 0
        %399 = vmatpush1.bf16.msra.mxu0 %v388
        %400 = vmatprep.subr.bf16.mxu0 0
        %401 = vmatpush1.bf16.msra.mxu0 %v374
        %402 = vmatprep.subr.bf16.mxu0 0
        %403 = vmatpush1.bf16.msra.mxu0 %v373
        %404 = vmatprep.subr.bf16.mxu0 0
        %405 = vmatpush1.bf16.msra.mxu0 %v372
        %406 = vmatprep.subr.bf16.mxu0 0
        %407 = vmatpush2.bf16.msra.mxu0 0
        %408 = vmatprep.subr.bf16.mxu0 0
        %409 = vmatpush2.bf16.msra.mxu0 0
        %410 = vmatprep.subr.bf16.mxu0 0
        %411 = vmatpush2.bf16.msra.mxu0 0
        %412 = vmatprep.subr.bf16.mxu0 0
        %413 = vmatpush2.bf16.msra.mxu0 0
        %414 = vmatprep.subr.bf16.mxu0 0
        %415 = vmatpush2.bf16.msra.mxu0 0
        %416 = vmatprep.subr.bf16.mxu0 0
        %417 = vmatpush2.bf16.msra.mxu0 0
        %418 = vmatprep.subr.bf16.mxu0 0
        %419 = vmatpush2.bf16.msra.mxu0 0
        %420 = vmatprep.subr.bf16.mxu0 0
        %421 = vmatpush2.bf16.msra.mxu0 0
        %422 = vmatprep.mubr.bf16.mxu0 0
        %423 = vmatmul.mubr.bf16.gmra.mxu0 %v381
        %v424 = vpop.f32.mrf.mxu0
        %v425 = vadd.f32 0.0, %v424
        %v426 = vpop.f32.mrf.mxu0
        %v427 = vpop.f32.mrf.mxu0
        %v428 = vadd.f32 0.0, %v427
        %v429 = vpop.f32.mrf.mxu0
        %430 = vdwg.mxu0
        %v431 = vpack.c.bf16 %v428, %v425
        %v432 = vld [vmem:[%s2] sm:$0xf]
        %v433 = vld [vmem:[%s2 + $0x4] sm:$0xf]
        %v434 = vld [vmem:[%s2 + $0x8] sm:$0xf]
        %v435 = vld [vmem:[%s2 + $0xc] sm:$0xf]
        %s436 = scalar_lea.vmem %s2, 16
        %v437 = vld [vmem:[%s436] sm:$0xf]
        %v438 = vld [vmem:[%s436 + $0x4] sm:$0xf]
        %v439 = vld [vmem:[%s436 + $0x8] sm:$0xf]
        %v440 = vld [vmem:[%s436 + $0xc] sm:$0xf]
        %v442 = vshrl.u32 %v431, 16
        %v444 = vshll.u32 %v431, 16
        %v446 = vrot.slane %v444, 1
        %v447 = vor.u32 %v442, %v446
        %v452 = vunpack.c.l.b16 %v437
        %v453 = vunpack.c.l.b16 %v438
        %v454 = vunpack.c.l.b16 %v439
        %v455 = vunpack.c.l.b16 %v440
        %v456 = vpack.c.b16 %v453, %v452
        %v457 = vpack.c.b16 %v455, %v454
        %vm460 = vcmask 261120
        %v462 = vsel %vm460, %v447, 0
        %464 = vmatprep.subr.bf16.mxu0 0
        %465 = vmatpush1.bf16.msra.mxu0 0
        %466 = vmatprep.subr.bf16.mxu0 0
        %467 = vmatpush1.bf16.msra.mxu0 0
        %468 = vmatprep.subr.bf16.mxu0 0
        %469 = vmatpush1.bf16.msra.mxu0 0
        %470 = vmatprep.subr.bf16.mxu0 0
        %471 = vmatpush1.bf16.msra.mxu0 0
        %472 = vmatprep.subr.bf16.mxu0 0
        %473 = vmatpush1.bf16.msra.mxu0 0
        %474 = vmatprep.subr.bf16.mxu0 0
        %475 = vmatpush1.bf16.msra.mxu0 0
        %476 = vmatprep.subr.bf16.mxu0 0
        %477 = vmatpush1.bf16.msra.mxu0 %v457
        %478 = vmatprep.subr.bf16.mxu0 0
        %479 = vmatpush1.bf16.msra.mxu0 %v456
        %480 = vmatprep.subr.bf16.mxu0 0
        %481 = vmatpush2.bf16.msra.mxu0 0
        %482 = vmatprep.subr.bf16.mxu0 0
        %483 = vmatpush2.bf16.msra.mxu0 0
        %484 = vmatprep.subr.bf16.mxu0 0
        %485 = vmatpush2.bf16.msra.mxu0 0
        %486 = vmatprep.subr.bf16.mxu0 0
        %487 = vmatpush2.bf16.msra.mxu0 0
        %488 = vmatprep.subr.bf16.mxu0 0
        %489 = vmatpush2.bf16.msra.mxu0 0
        %490 = vmatprep.subr.bf16.mxu0 0
        %491 = vmatpush2.bf16.msra.mxu0 0
        %492 = vmatprep.subr.bf16.mxu0 0
        %493 = vmatpush2.bf16.msra.mxu0 0
        %494 = vmatprep.subr.bf16.mxu0 0
        %495 = vmatpush2.bf16.msra.mxu0 0
        %496 = vmatprep.mubr.bf16.mxu0 0
        %497 = vmatmul.mubr.bf16.gmra.mxu0 %v462
        %v498 = vpop.f32.mrf.mxu0
        %v499 = vadd.f32 0.0, %v498
        %v500 = vpop.f32.mrf.mxu0
        %v501 = vpop.f32.mrf.mxu0
        %v502 = vpop.f32.mrf.mxu0
        %503 = vdwg.mxu0
        %v508 = vunpack.c.l.b16 %v432
        %v509 = vunpack.c.l.b16 %v433
        %v510 = vunpack.c.l.b16 %v434
        %v511 = vunpack.c.l.b16 %v435
        %v512 = vpack.c.b16 %v509, %v508
        %v513 = vpack.c.b16 %v511, %v510
        %v516 = vsel %vm460, %v431, 0
        %518 = vmatprep.subr.bf16.mxu0 0
        %519 = vmatpush1.bf16.msra.mxu0 0
        %520 = vmatprep.subr.bf16.mxu0 0
        %521 = vmatpush1.bf16.msra.mxu0 0
        %522 = vmatprep.subr.bf16.mxu0 0
        %523 = vmatpush1.bf16.msra.mxu0 0
        %524 = vmatprep.subr.bf16.mxu0 0
        %525 = vmatpush1.bf16.msra.mxu0 0
        %526 = vmatprep.subr.bf16.mxu0 0
        %527 = vmatpush1.bf16.msra.mxu0 0
        %528 = vmatprep.subr.bf16.mxu0 0
        %529 = vmatpush1.bf16.msra.mxu0 0
        %530 = vmatprep.subr.bf16.mxu0 0
        %531 = vmatpush1.bf16.msra.mxu0 %v513
        %532 = vmatprep.subr.bf16.mxu0 0
        %533 = vmatpush1.bf16.msra.mxu0 %v512
        %534 = vmatprep.subr.bf16.mxu0 0
        %535 = vmatpush2.bf16.msra.mxu0 0
        %536 = vmatprep.subr.bf16.mxu0 0
        %537 = vmatpush2.bf16.msra.mxu0 0
        %538 = vmatprep.subr.bf16.mxu0 0
        %539 = vmatpush2.bf16.msra.mxu0 0
        %540 = vmatprep.subr.bf16.mxu0 0
        %541 = vmatpush2.bf16.msra.mxu0 0
        %542 = vmatprep.subr.bf16.mxu0 0
        %543 = vmatpush2.bf16.msra.mxu0 0
        %544 = vmatprep.subr.bf16.mxu0 0
        %545 = vmatpush2.bf16.msra.mxu0 0
        %546 = vmatprep.subr.bf16.mxu0 0
        %547 = vmatpush2.bf16.msra.mxu0 0
        %548 = vmatprep.subr.bf16.mxu0 0
        %549 = vmatpush2.bf16.msra.mxu0 0
        %550 = vmatprep.mubr.bf16.mxu0 0
        %551 = vmatmul.mubr.bf16.gmra.mxu0 %v516
        %v552 = vpop.f32.mrf.mxu0
        %v553 = vadd.f32 %v499, %v552
        %v554 = vpop.f32.mrf.mxu0
        %v555 = vpop.f32.mrf.mxu0
        %v556 = vpop.f32.mrf.mxu0
        %557 = vdwg.mxu0
        %s558 = scalar_lea.vmem %s2, 32
        %v559 = vld [vmem:[%s558] sm:$0xf]
        %v560 = vld [vmem:[%s558 + $0x4] sm:$0xf]
        %v561 = vld [vmem:[%s558 + $0x8] sm:$0xf]
        %v562 = vld [vmem:[%s558 + $0xc] sm:$0xf]
        %v564 = vrot.slane %v431, 1
        %v569 = vunpack.c.l.b16 %v559
        %v570 = vunpack.c.l.b16 %v560
        %v571 = vunpack.c.l.b16 %v561
        %v572 = vunpack.c.l.b16 %v562
        %v573 = vpack.c.b16 %v570, %v569
        %v574 = vpack.c.b16 %v572, %v571
        %v578 = vsel %vm460, %v564, 0
        %580 = vmatprep.subr.bf16.mxu0 0
        %581 = vmatpush1.bf16.msra.mxu0 0
        %582 = vmatprep.subr.bf16.mxu0 0
        %583 = vmatpush1.bf16.msra.mxu0 0
        %584 = vmatprep.subr.bf16.mxu0 0
        %585 = vmatpush1.bf16.msra.mxu0 0
        %586 = vmatprep.subr.bf16.mxu0 0
        %587 = vmatpush1.bf16.msra.mxu0 0
        %588 = vmatprep.subr.bf16.mxu0 0
        %589 = vmatpush1.bf16.msra.mxu0 0
        %590 = vmatprep.subr.bf16.mxu0 0
        %591 = vmatpush1.bf16.msra.mxu0 0
        %592 = vmatprep.subr.bf16.mxu0 0
        %593 = vmatpush1.bf16.msra.mxu0 %v574
        %594 = vmatprep.subr.bf16.mxu0 0
        %595 = vmatpush1.bf16.msra.mxu0 %v573
        %596 = vmatprep.subr.bf16.mxu0 0
        %597 = vmatpush2.bf16.msra.mxu0 0
        %598 = vmatprep.subr.bf16.mxu0 0
        %599 = vmatpush2.bf16.msra.mxu0 0
        %600 = vmatprep.subr.bf16.mxu0 0
        %601 = vmatpush2.bf16.msra.mxu0 0
        %602 = vmatprep.subr.bf16.mxu0 0
        %603 = vmatpush2.bf16.msra.mxu0 0
        %604 = vmatprep.subr.bf16.mxu0 0
        %605 = vmatpush2.bf16.msra.mxu0 0
        %606 = vmatprep.subr.bf16.mxu0 0
        %607 = vmatpush2.bf16.msra.mxu0 0
        %608 = vmatprep.subr.bf16.mxu0 0
        %609 = vmatpush2.bf16.msra.mxu0 0
        %610 = vmatprep.subr.bf16.mxu0 0
        %611 = vmatpush2.bf16.msra.mxu0 0
        %612 = vmatprep.mubr.bf16.mxu0 0
        %613 = vmatmul.mubr.bf16.gmra.mxu0 %v578
        %v614 = vpop.f32.mrf.mxu0
        %v615 = vadd.f32 0.0, %v614
        %v616 = vpop.f32.mrf.mxu0
        %v617 = vpop.f32.mrf.mxu0
        %v618 = vpop.f32.mrf.mxu0
        %619 = vdwg.mxu0
        %v620 = vadd.f32 %v553, %v615
        %v621 = vld [vmem:[%s3] sm:$0x1]
        %v623 = vlaneseq
        %v624 = vshrl.u32 %v623, 7
        %v625 = vsub.s32 0, %v624
        %v626 = vrot.slane %v621, %v625
        %v628 = vadd.f32 %v620, %v626
        %v629 = vmax.f32 %v628, 0.0
        %630 = vst.msk [vmem:[%s323] sm:$0xff] %vm460, %v629
        %v631 = vld [vmem:[%s4] sm:$0x1]
        %v633 = vlaneseq
        %v634 = vshrl.u32 %v633, 7
        %v635 = vsub.s32 0, %v634
        %v636 = vrot.slane %v631, %v635
        %v638 = vmul.f32 %v629, %v636
        %v639 = vsel %vm460, %v638, 0.0
        %640 = vadd.xlane.f32.xlu0 %v639
        %v641 = vpop.xlane.xlu0 %640
        %s642 = sld [smem:[#allocation5]]
        %v643 = vstv %s642
        %v644 = vadd.f32 %v641, %v643
        %s645 = smul.u32 %s28, 8
        %v646 = vlaneseq
        %v647 = vshrl.u32 %v646, 7
        %v648 = vstv %s645
        %v649 = vadd.s32 %v648, %v647
        %vm650 = vcmp.lt.s32.totalorder %v649, 12
        %v651 = vsel %vm650, %v644, -1e+30
        %v652 = vld [vmem:[#allocation2] sm:$0x1]
        %v653 = vrot.slane %v651, 4
        %v654 = vmax.f32 %v651, %v653
        %v655 = vrot.slane %v654, 2
        %v656 = vmax.f32 %v654, %v655
        %v657 = vrot.slane %v656, 1
        %v658 = vmax.f32 %v656, %v657
        %s659 = vtos %v658
        %v660 = vstv %s659
        %v661 = vmax.f32 %v652, %v660
        %v662 = vsub.f32 %v652, %v661
        %v663 = vmul.f32 %v662, 1.442695
        %v664 = vpow.pop %v663
        %v666 = vlaneseq
        %v667 = vshrl.u32 %v666, 7
        %v668 = vsub.s32 0, %v667
        %v669 = vrot.slane %v661, %v668
        %v671 = vsub.f32 %v651, %v669
        %v672 = vmul.f32 %v671, 1.442695
        %v673 = vpow.pop %v672
        %v674 = vld [vmem:[#allocation3] sm:$0x1]
        %v675 = vmul.f32 %v664, %v674
        %vm676 = vcmask 7168
        %v677 = vsel %vm676, %v673, 0.0
        %678 = vadd.xlane.f32.xlu0 %v677
        %v679 = vpop.xlane.xlu0 %678
        %v680 = vrot.slane %v679, 4
        %v681 = vadd.f32 %v679, %v680
        %v682 = vrot.slane %v681, 2
        %v683 = vadd.f32 %v681, %v682
        %v684 = vrot.slane %v683, 1
        %v685 = vadd.f32 %v683, %v684
        %s686 = vtos %v685
        %v687 = vstv %s686
        %v688 = vadd.f32 %v675, %v687
        %vm689 = vcmask 0
        %690 = vst.msk [vmem:[#allocation3] sm:$0x1] %vm689, %v688
        %v691 = vld [vmem:[#allocation4] sm:$0x1]
        %693 = vset.pattern.permute.xlu0 0
        %694 = vperm.xlu0 %693, %v664
        %v695 = vpop.permute.xlu0 %694
        %v697 = vlaneseq
        %v698 = vshrl.u32 %v697, 7
        %v699 = vsub.s32 0, %v698
        %v700 = vrot.slane %v695, %v699
        %v701 = vmul.f32 %v700, %v691
        %703 = vset.pattern.permute.xlu0 0
        %704 = vperm.xlu0 %703, %v673
        %v705 = vpop.permute.xlu0 %704
        %v707 = vmul.f32 %v705, %v629
        %v708 = vsel %vm460, %v707, 0.0
        %v709 = vrot.slane %v708, 4
        %v710 = vadd.f32 %v708, %v709
        %v711 = vrot.slane %v710, 2
        %v712 = vadd.f32 %v710, %v711
        %v713 = vrot.slane %v712, 1
        %v714 = vadd.f32 %v712, %v713
        %v715 = vadd.f32 %v701, %v714
        %vm716 = vcmask 253952
        %717 = vst.msk [vmem:[#allocation4] sm:$0x1] %vm716, %v715
        %718 = vst.msk [vmem:[#allocation2] sm:$0x1] %vm689, %v661
        %p719 = scmp.eq.s32.totalorder %s28, 1
        // Predicated region
        $region49: #{encoder_forward.1} parent=43 // pred_check
          %p720 = pneg %p719
        $region50: #{encoder_forward.1} parent=43 // pred_check_branch
          %722 = sbr.rel (%p720) target = $region52
        $region51: #{encoder_forward.1} parent=43 // pred_region
          %v723 = vld [vmem:[#allocation4] sm:$0x1]
          %v724 = vld [vmem:[#allocation3] sm:$0x1]
          %v725 = vrcp.pop %v724
          %727 = vset.pattern.permute.xlu0 0
          %728 = vperm.xlu0 %727, %v725
          %v729 = vpop.permute.xlu0 %728
          %v731 = vlaneseq
          %v732 = vshrl.u32 %v731, 7
          %v733 = vsub.s32 0, %v732
          %v734 = vrot.slane %v729, %v733
          %v735 = vmul.f32 %v723, %v734
          %736 = vst.msk [vmem:[%s306] sm:$0x1] %vm716, %v735
        $region52: #{encoder_forward.1} parent=43 // pred_fallthru
          _
        %p737 = scmp.lt.s32.totalorder %s27, 1
        %s738 = scalar_select %p737, %s27, 1
        %p739 = scmp.lt.s32.totalorder %s28, 1
        %s740 = scalar_select %p739, %s28, 1
        %s741 = smul.addr %s738, 2
        %s742 = sadd.s32 %s740, %s741
        %s743 = smul.addr %s742, 8
        %s744 = scalar_lea.vmem %s6, %s743
        %s745 = sand.u32 %s204, 1
        %s746 = scalar_lea.sflag [#allocation7], %s745
        %s747 = sand.u32 %s204, 1
        %s748 = scalar_lea.vmem [#allocation6], %s747
        // Predicated region
        $region53: #{encoder_forward.1} parent=43 // pred_check
          %p749 = pneg %p188
        $region54: #{encoder_forward.1} parent=43 // pred_check_branch
          %751 = sbr.rel (%p749) target = $region56
        $region55: #{encoder_forward.1} parent=43 // pred_region
          _
        $region56: #{encoder_forward.1} parent=43 // pred_fallthru
          _
        // Predicated region
        $region57: #{encoder_forward.1} parent=43 // pred_check
          %p752 = pneg %p214
        $region58: #{encoder_forward.1} parent=43 // pred_check_branch
          %754 = sbr.rel (%p752) target = $region60
        $region59: #{encoder_forward.1} parent=43 // pred_region
          %s756 = ssub.s32 16, 16
          %757 = vsyncadd %s746, %s756
          %s758 = smul.addr %s27, 16
          %s759 = scalar_lea.hbm %s7, %s758
          %s761 = sshll.u32 %s748, 4
          %s762 = int_to_ptr.vmem [resolvable:$true] %s761
          %764 = dma.vmem_to_hbm [thread:$0]  %s762, 16, %s759, %s746
        $region60: #{encoder_forward.1} parent=43 // pred_fallthru
          _
      $region44: #{encoder_forward.1} parent=5 // pred_fallthru
        _
      %p765 = scmp.le.s32.totalorder 2, %s18
      // Predicated region
      $region61: #{encoder_forward.1} parent=5 // pred_check
        %p766 = pneg %p765
      $region62: #{encoder_forward.1} parent=5 // pred_check_branch
        %768 = sbr.rel (%p766) target = $region64
      $region63: #{encoder_forward.1} parent=5 // pred_region
        %s769 = ssub.s32 %s18, 2
        // Predicated region
        $region65: #{encoder_forward.1} parent=63 // pred_check
          %p770 = pneg %p194
        $region66: #{encoder_forward.1} parent=63 // pred_check_branch
          %772 = sbr.rel (%p770) target = $region68
        $region67: #{encoder_forward.1} parent=63 // pred_region
          %p773 = scmp.lt.s32.totalorder %s29, 1
          %s774 = scalar_select %p773, %s29, 1
          %p775 = scmp.lt.s32.totalorder %s30, 1
          %s776 = scalar_select %p775, %s30, 1
          %s777 = smul.addr %s774, 2
          %s778 = sadd.s32 %s776, %s777
          %s779 = smul.addr %s778, 8
          %s780 = scalar_lea.vmem %s6, %s779
        $region68: #{encoder_forward.1} parent=63 // pred_fallthru
          _
        // Predicated region
        $region69: #{encoder_forward.1} parent=63 // pred_check
          %p781 = pneg %p220
        $region70: #{encoder_forward.1} parent=63 // pred_check_branch
          %783 = sbr.rel (%p781) target = $region72
        $region71: #{encoder_forward.1} parent=63 // pred_region
          %s784 = sand.u32 %s205, 1
          %s785 = scalar_lea.sflag [#allocation7], %s784
          %s786 = sand.u32 %s205, 1
          %s787 = scalar_lea.vmem [#allocation6], %s786
          %788 = dma.done %s785, 16
        $region72: #{encoder_forward.1} parent=63 // pred_fallthru
          _
      $region64: #{encoder_forward.1} parent=5 // pred_fallthru
        _
    $region6: #{encoder_forward.1} parent=1 // loop_footer
      %s22 = sadd.s32 1, %s18
    $region7: #{encoder_forward.1} parent=1 // loop_footer_branch
      %17 = sbr.rel target = $region3
    $region8: #{encoder_forward.1} parent=1 // loop_exit
      _
    %789 = vsyncpa [#allocation7], 1
    %s790 = scalar_lea.sflag [#allocation7], 1
    %791 = vsyncpa %s790, 1

</llo_original>
